<compile_context>
chip_gen: v6e
topology: v6e:2x2x1
jax: 0.10.0
libtpu: 0.0.40
codegen_flags: <defaults>
</compile_context>

<pallas_src>
import functools

import jax
import jax.numpy as jnp
from jax.experimental import pallas as pl
from jax.experimental.pallas import tpu as pltpu


IN_FEATURES = 10
TILE_B = 1024  # batch tile for the scaled path; safe on v5e/v6e/v7x VMEM


def affine_kernel(x_ref, w_ref, b_ref, o_ref):
    """out = x @ w + b, computed on the VPU (K is tiny, skip the MXU).

    x_ref: [B_blk, IN]   w_ref: [IN, NC_pad]   b_ref: [1, NC_pad]
    o_ref: [B_blk, NC_pad]
    """
    x = x_ref[...].astype(jnp.float32)          # [B_blk, IN]
    w = w_ref[...].astype(jnp.float32)          # [IN, NC_pad]
    acc = jnp.zeros(o_ref.shape, jnp.float32)   # [B_blk, NC_pad]
    # IN is a small static constant -> unrolled broadcast-FMA chain on the VPU.
    for k in range(x_ref.shape[1]):
        acc = acc + x[:, k:k + 1] * w[k:k + 1, :]
    o_ref[...] = (acc + b_ref[...].astype(jnp.float32)).astype(o_ref.dtype)


def pack_affine_params(weight, bias):
    """Convert torch-style params ([NC, IN], [NC]) to kernel layout, once.

    Returns (w_packed [IN, NC_pad], b_packed [1, NC_pad]) with NC_pad a
    multiple of 128 (lane-dense), zero-padded beyond the real NC.
    """
    nc, in_f = weight.shape
    nc_pad = 128 * pl.cdiv(nc, 128)
    w_packed = jnp.zeros((in_f, nc_pad), weight.dtype).at[:, :nc].set(weight.T)
    b_packed = jnp.zeros((1, nc_pad), bias.dtype).at[0, :nc].set(bias)
    return w_packed, b_packed


@functools.partial(jax.jit, static_argnames=("num_classes", "tile_b"))
def affine_model_forward(x, w_packed, b_packed, num_classes, tile_b=TILE_B):
    """x: [B, 10]; w_packed: [10, NC_pad]; b_packed: [1, NC_pad]."""
    B, in_f = x.shape
    nc_pad = w_packed.shape[1]
    vmem = pltpu.MemorySpace.VMEM

    if B <= tile_b:
        # Small batch: one gridless call, full arrays resident in VMEM.
        # (At this size the call is launch-overhead bound anyway; keep it as
        #  cheap as possible: no grid, no pipeline bookkeeping.)
        out_p = pl.pallas_call(
            affine_kernel,
            out_shape=jax.ShapeDtypeStruct((B, nc_pad), x.dtype),
            in_specs=[
                pl.BlockSpec(memory_space=vmem),
                pl.BlockSpec(memory_space=vmem),
                pl.BlockSpec(memory_space=vmem),
            ],
            out_specs=pl.BlockSpec(memory_space=vmem),
        )(x, w_packed, b_packed)
        return out_p[:, :num_classes]

    # Scaled batch: tile over rows, pipeline HBM<->VMEM, shard across cores.
    n_tiles = pl.cdiv(B, tile_b)
    b_pad = n_tiles * tile_b
    x_p = x if b_pad == B else jnp.zeros((b_pad, in_f), x.dtype).at[:B].set(x)

    out_p = pl.pallas_call(
        affine_kernel,
        out_shape=jax.ShapeDtypeStruct((b_pad, nc_pad), x.dtype),
        grid=(n_tiles,),
        in_specs=[
            pl.BlockSpec((tile_b, in_f), lambda i: (i, 0)),
            pl.BlockSpec((in_f, nc_pad), lambda i: (0, 0)),
            pl.BlockSpec((1, nc_pad), lambda i: (0, 0)),
        ],
        out_specs=pl.BlockSpec((tile_b, nc_pad), lambda i: (i, 0)),
        compiler_params=pltpu.CompilerParams(
            dimension_semantics=("parallel",)),
    )(x_p, w_packed, b_packed)
    return out_p[:B, :num_classes]


def init_affine_params(key, num_classes, in_features=IN_FEATURES):
    """Deterministic torch.nn.Linear-style init: U(-1/sqrt(in), 1/sqrt(in))."""
    kw, kb = jax.random.split(key)
    bound = 1.0 / (in_features ** 0.5)
    weight = jax.random.uniform(
        kw, (num_classes, in_features), jnp.float32, -bound, bound)
    bias = jax.random.uniform(
        kb, (num_classes,), jnp.float32, -bound, bound)
    return weight, bias


if __name__ == "__main__":
    key = jax.random.PRNGKey(0)
    k_in, k_param, k_big = jax.random.split(key, 3)

    num_classes = 4
    batch = 8
    in_features = IN_FEATURES

    # Params: torch-style init, then packed once into kernel layout.
    weight, bias = init_affine_params(k_param, num_classes, in_features)
    w_packed, b_packed = pack_affine_params(weight, bias)

    # --- small-batch path (gridless, full-block VMEM) ---
    x = jax.random.normal(k_in, (batch, in_features), jnp.float32)
    out = affine_model_forward(x, w_packed, b_packed, num_classes)
    out = jax.block_until_ready(out)
    ref = x @ weight.T + bias
    assert out.shape == (batch, num_classes)
    assert jnp.allclose(out, ref, atol=1e-5, rtol=1e-5)

    # --- batch-tiled path (grid over rows, "parallel" axis) ---
    big_batch = 2 * TILE_B + 40  # non-multiple of TILE_B to exercise padding
    xb = jax.random.normal(k_big, (big_batch, in_features), jnp.float32)
    outb = affine_model_forward(xb, w_packed, b_packed, num_classes)
    outb = jax.block_until_ready(outb)
    refb = xb @ weight.T + bias
    assert outb.shape == (big_batch, num_classes)
    assert jnp.allclose(outb, refb, atol=1e-4, rtol=1e-4)

    print("KERNEL_OK")
</pallas_src>

<mosaic_0001>
module attributes {stable_mosaic.version = 11 : i64} {
  func.func @affine_kernel(%arg0: memref<8x10xf32, #tpu.memory_space<vmem>>, %arg1: memref<10x128xf32, #tpu.memory_space<vmem>>, %arg2: memref<1x128xf32, #tpu.memory_space<vmem>>, %arg3: memref<8x128xf32, #tpu.memory_space<vmem>>) attributes {dimension_semantics = [], scalar_prefetch = 0 : i64, scratch_operands = 0 : i64, tpu.core_type = #tpu.core_type<tc>} {
    %c0 = arith.constant 0 : index
    %c0_0 = arith.constant 0 : index
    %0 = vector.load %arg0[%c0, %c0_0] : memref<8x10xf32, #tpu.memory_space<vmem>>, vector<8x10xf32>
    %c0_1 = arith.constant 0 : index
    %c0_2 = arith.constant 0 : index
    %1 = vector.load %arg1[%c0_1, %c0_2] : memref<10x128xf32, #tpu.memory_space<vmem>>, vector<10x128xf32>
    %cst = arith.constant 0.000000e+00 : f32
    %2 = vector.broadcast %cst : f32 to vector<8x128xf32>
    %3 = vector.extract_strided_slice %0 {offsets = [0, 0], sizes = [8, 1], strides = [1, 1]} : vector<8x10xf32> to vector<8x1xf32>
    %4 = vector.extract_strided_slice %1 {offsets = [0, 0], sizes = [1, 128], strides = [1, 1]} : vector<10x128xf32> to vector<1x128xf32>
    %5 = vector.broadcast %3 : vector<8x1xf32> to vector<8x128xf32>
    %6 = vector.broadcast %4 : vector<1x128xf32> to vector<8x128xf32>
    %7 = arith.mulf %5, %6 : vector<8x128xf32>
    %8 = arith.addf %2, %7 : vector<8x128xf32>
    %9 = vector.extract_strided_slice %0 {offsets = [0, 1], sizes = [8, 1], strides = [1, 1]} : vector<8x10xf32> to vector<8x1xf32>
    %10 = vector.extract_strided_slice %1 {offsets = [1, 0], sizes = [1, 128], strides = [1, 1]} : vector<10x128xf32> to vector<1x128xf32>
    %11 = vector.broadcast %9 : vector<8x1xf32> to vector<8x128xf32>
    %12 = vector.broadcast %10 : vector<1x128xf32> to vector<8x128xf32>
    %13 = arith.mulf %11, %12 : vector<8x128xf32>
    %14 = arith.addf %8, %13 : vector<8x128xf32>
    %15 = vector.extract_strided_slice %0 {offsets = [0, 2], sizes = [8, 1], strides = [1, 1]} : vector<8x10xf32> to vector<8x1xf32>
    %16 = vector.extract_strided_slice %1 {offsets = [2, 0], sizes = [1, 128], strides = [1, 1]} : vector<10x128xf32> to vector<1x128xf32>
    %17 = vector.broadcast %15 : vector<8x1xf32> to vector<8x128xf32>
    %18 = vector.broadcast %16 : vector<1x128xf32> to vector<8x128xf32>
    %19 = arith.mulf %17, %18 : vector<8x128xf32>
    %20 = arith.addf %14, %19 : vector<8x128xf32>
    %21 = vector.extract_strided_slice %0 {offsets = [0, 3], sizes = [8, 1], strides = [1, 1]} : vector<8x10xf32> to vector<8x1xf32>
    %22 = vector.extract_strided_slice %1 {offsets = [3, 0], sizes = [1, 128], strides = [1, 1]} : vector<10x128xf32> to vector<1x128xf32>
    %23 = vector.broadcast %21 : vector<8x1xf32> to vector<8x128xf32>
    %24 = vector.broadcast %22 : vector<1x128xf32> to vector<8x128xf32>
    %25 = arith.mulf %23, %24 : vector<8x128xf32>
    %26 = arith.addf %20, %25 : vector<8x128xf32>
    %27 = vector.extract_strided_slice %0 {offsets = [0, 4], sizes = [8, 1], strides = [1, 1]} : vector<8x10xf32> to vector<8x1xf32>
    %28 = vector.extract_strided_slice %1 {offsets = [4, 0], sizes = [1, 128], strides = [1, 1]} : vector<10x128xf32> to vector<1x128xf32>
    %29 = vector.broadcast %27 : vector<8x1xf32> to vector<8x128xf32>
    %30 = vector.broadcast %28 : vector<1x128xf32> to vector<8x128xf32>
    %31 = arith.mulf %29, %30 : vector<8x128xf32>
    %32 = arith.addf %26, %31 : vector<8x128xf32>
    %33 = vector.extract_strided_slice %0 {offsets = [0, 5], sizes = [8, 1], strides = [1, 1]} : vector<8x10xf32> to vector<8x1xf32>
    %34 = vector.extract_strided_slice %1 {offsets = [5, 0], sizes = [1, 128], strides = [1, 1]} : vector<10x128xf32> to vector<1x128xf32>
    %35 = vector.broadcast %33 : vector<8x1xf32> to vector<8x128xf32>
    %36 = vector.broadcast %34 : vector<1x128xf32> to vector<8x128xf32>
    %37 = arith.mulf %35, %36 : vector<8x128xf32>
    %38 = arith.addf %32, %37 : vector<8x128xf32>
    %39 = vector.extract_strided_slice %0 {offsets = [0, 6], sizes = [8, 1], strides = [1, 1]} : vector<8x10xf32> to vector<8x1xf32>
    %40 = vector.extract_strided_slice %1 {offsets = [6, 0], sizes = [1, 128], strides = [1, 1]} : vector<10x128xf32> to vector<1x128xf32>
    %41 = vector.broadcast %39 : vector<8x1xf32> to vector<8x128xf32>
    %42 = vector.broadcast %40 : vector<1x128xf32> to vector<8x128xf32>
    %43 = arith.mulf %41, %42 : vector<8x128xf32>
    %44 = arith.addf %38, %43 : vector<8x128xf32>
    %45 = vector.extract_strided_slice %0 {offsets = [0, 7], sizes = [8, 1], strides = [1, 1]} : vector<8x10xf32> to vector<8x1xf32>
    %46 = vector.extract_strided_slice %1 {offsets = [7, 0], sizes = [1, 128], strides = [1, 1]} : vector<10x128xf32> to vector<1x128xf32>
    %47 = vector.broadcast %45 : vector<8x1xf32> to vector<8x128xf32>
    %48 = vector.broadcast %46 : vector<1x128xf32> to vector<8x128xf32>
    %49 = arith.mulf %47, %48 : vector<8x128xf32>
    %50 = arith.addf %44, %49 : vector<8x128xf32>
    %51 = vector.extract_strided_slice %0 {offsets = [0, 8], sizes = [8, 1], strides = [1, 1]} : vector<8x10xf32> to vector<8x1xf32>
    %52 = vector.extract_strided_slice %1 {offsets = [8, 0], sizes = [1, 128], strides = [1, 1]} : vector<10x128xf32> to vector<1x128xf32>
    %53 = vector.broadcast %51 : vector<8x1xf32> to vector<8x128xf32>
    %54 = vector.broadcast %52 : vector<1x128xf32> to vector<8x128xf32>
    %55 = arith.mulf %53, %54 : vector<8x128xf32>
    %56 = arith.addf %50, %55 : vector<8x128xf32>
    %57 = vector.extract_strided_slice %0 {offsets = [0, 9], sizes = [8, 1], strides = [1, 1]} : vector<8x10xf32> to vector<8x1xf32>
    %58 = vector.extract_strided_slice %1 {offsets = [9, 0], sizes = [1, 128], strides = [1, 1]} : vector<10x128xf32> to vector<1x128xf32>
    %59 = vector.broadcast %57 : vector<8x1xf32> to vector<8x128xf32>
    %60 = vector.broadcast %58 : vector<1x128xf32> to vector<8x128xf32>
    %61 = arith.mulf %59, %60 : vector<8x128xf32>
    %62 = arith.addf %56, %61 : vector<8x128xf32>
    %c0_3 = arith.constant 0 : index
    %c0_4 = arith.constant 0 : index
    %63 = vector.load %arg2[%c0_3, %c0_4] : memref<1x128xf32, #tpu.memory_space<vmem>>, vector<1x128xf32>
    %64 = vector.broadcast %63 : vector<1x128xf32> to vector<8x128xf32>
    %65 = arith.addf %62, %64 : vector<8x128xf32>
    %c0_5 = arith.constant 0 : index
    %c0_6 = arith.constant 0 : index
    %66 = vector.load %arg3[%c0_5, %c0_6] : memref<8x128xf32, #tpu.memory_space<vmem>>, vector<8x128xf32>
    tpu.vector_store %arg3[%c0_5, %c0_6], %65 {strides = array<i32>} : memref<8x128xf32, #tpu.memory_space<vmem>>, vector<8x128xf32>,
    return
  }
}

</mosaic_0001>

<llo_original>
// kernel: affine_model_forward.1
$region0: #{affine_model_forward.1}
  #allocation0 [shape = 'u32[]', space=smem, size = 0x4, offset = 0x4, fixed_abs, tag = 'smem constant byte address 0x4 - core index']
  #allocation1 [shape = 'u32[144,128]{1,0:T(1,128)}', space=vmem, size = 0x12000, scoped, tag = 'internal scratch']
  %s0 = inlined_call_operand.hbm [shape: f32[8,10], index: 0, kind: input, shape index: {}]
  %s1 = inlined_call_operand.hbm [shape: f32[10,128], index: 1, kind: input, shape index: {}]
  %s2 = inlined_call_operand.vmem [shape: f32[1,128], index: 2, kind: input, shape index: {}]
  %s3 = inlined_call_operand.vmem [shape: f32[8,128], index: 3, kind: output, shape index: {}]
  %s4 = sld [smem:[#allocation0]]
  $region30: #{affine_model_forward.1} parent=0
    _
  %s6 = ssub.s32 1, %s4
  %s7 = scalar_select 0, %s6, %s4
  $region1: #{affine_model_forward.1} parent=0
    #allocation2 [shape = 'u8[4096]{0}', space=vmem, size = 0x1000, scoped, tag = 'input window, operand 0, single buffered']
    #allocation3 [shape = 's32[1]{0}', space=sflag, size = 0x4, scoped, tag = 'scoped memory for affine_model_forward.1']
    #allocation4 [shape = 'u8[8192]{0}', space=vmem, size = 0x2000, scoped, tag = 'input window, operand 1, single buffered']
    #allocation5 [shape = 's32[1]{0}', space=sflag, size = 0x4, scoped, tag = 'scoped memory for affine_model_forward.1']
    %8 = vsyncpa [#allocation3], 0
    %9 = vsyncpa [#allocation5], 0
    // Predicated region
    $region2: #{affine_model_forward.1} parent=1 // pred_check
      _
    $region3: #{affine_model_forward.1} parent=1 // pred_check_branch
      %11 = sbr.rel (0) target = $region5
    $region4: #{affine_model_forward.1} parent=1 // pred_region
      %s13 = ssub.s32 128, 128
      %14 = vsyncadd [#allocation3], %s13
      %s16 = sshll.u32 [#allocation2], 4
      %s17 = int_to_ptr.vmem [resolvable:$true] %s16
      %19 = dma.hbm_to_vmem [thread:$0]  %s0, 128, %s17, [#allocation3]
    $region5: #{affine_model_forward.1} parent=1 // pred_fallthru
      _
    // Predicated region
    $region6: #{affine_model_forward.1} parent=1 // pred_check
      _
    $region7: #{affine_model_forward.1} parent=1 // pred_check_branch
      %21 = sbr.rel (0) target = $region9
    $region8: #{affine_model_forward.1} parent=1 // pred_region
      %s23 = ssub.s32 256, 256
      %24 = vsyncadd [#allocation5], %s23
      %s25 = sshll.u32 [#allocation4], 4
      %s26 = int_to_ptr.vmem [resolvable:$true] %s25
      %31 = dma.hbm_to_vmem [thread:$0]  %s1, 256, %s26, [#allocation5], 128, 128, 8
    $region9: #{affine_model_forward.1} parent=1 // pred_fallthru
      _
    // Predicated region
    $region10: #{affine_model_forward.1} parent=1 // pred_check
      _
    $region11: #{affine_model_forward.1} parent=1 // pred_check_branch
      %33 = sbr.rel (0) target = $region13
    $region12: #{affine_model_forward.1} parent=1 // pred_region
      _
    $region13: #{affine_model_forward.1} parent=1 // pred_fallthru
      _
    // Predicated region
    $region14: #{affine_model_forward.1} parent=1 // pred_check
      _
    $region15: #{affine_model_forward.1} parent=1 // pred_check_branch
      %35 = sbr.rel (0) target = $region17
    $region16: #{affine_model_forward.1} parent=1 // pred_region
      %36 = dma.done [#allocation3], 128
    $region17: #{affine_model_forward.1} parent=1 // pred_fallthru
      _
    // Predicated region
    $region18: #{affine_model_forward.1} parent=1 // pred_check
      _
    $region19: #{affine_model_forward.1} parent=1 // pred_check_branch
      %38 = sbr.rel (0) target = $region21
    $region20: #{affine_model_forward.1} parent=1 // pred_region
      %39 = dma.done [#allocation5], 256
    $region21: #{affine_model_forward.1} parent=1 // pred_fallthru
      _
    %v40 = vld [vmem:[#allocation2] sm:$0xff]
    %v41 = vld [vmem:[#allocation4] sm:$0xff]
    %v42 = vld [vmem:[#allocation4 + $0x8] sm:$0x3]
    %44 = vset.pattern.permute.xlu0 0
    %45 = vperm.xlu0 %44, %v40
    %v46 = vpop.permute.xlu0 %45
    %v48 = vlaneseq
    %v49 = vshrl.u32 %v48, 7
    %v50 = vsub.s32 0, %v49
    %v51 = vrot.slane %v41, %v50
    %v52 = vmul.f32 %v46, %v51
    %v53 = vadd.f32 %v52, 0.0
    %54 = vset.pattern.permute.xlu0 1
    %55 = vperm.xlu0 %54, %v40
    %v56 = vpop.permute.xlu0 %55
    %v58 = vlaneseq
    %v59 = vshrl.u32 %v58, 7
    %v60 = vsub.s32 1, %v59
    %v61 = vrot.slane %v41, %v60
    %v62 = vmul.f32 %v56, %v61
    %v63 = vadd.f32 %v53, %v62
    %64 = vset.pattern.permute.xlu0 2
    %65 = vperm.xlu0 %64, %v40
    %v66 = vpop.permute.xlu0 %65
    %v68 = vlaneseq
    %v69 = vshrl.u32 %v68, 7
    %v70 = vsub.s32 2, %v69
    %v71 = vrot.slane %v41, %v70
    %v72 = vmul.f32 %v66, %v71
    %v73 = vadd.f32 %v63, %v72
    %74 = vset.pattern.permute.xlu0 3
    %75 = vperm.xlu0 %74, %v40
    %v76 = vpop.permute.xlu0 %75
    %v78 = vlaneseq
    %v79 = vshrl.u32 %v78, 7
    %v80 = vsub.s32 3, %v79
    %v81 = vrot.slane %v41, %v80
    %v82 = vmul.f32 %v76, %v81
    %v83 = vadd.f32 %v73, %v82
    %84 = vset.pattern.permute.xlu0 4
    %85 = vperm.xlu0 %84, %v40
    %v86 = vpop.permute.xlu0 %85
    %v88 = vlaneseq
    %v89 = vshrl.u32 %v88, 7
    %v90 = vsub.s32 4, %v89
    %v91 = vrot.slane %v41, %v90
    %v92 = vmul.f32 %v86, %v91
    %v93 = vadd.f32 %v83, %v92
    %94 = vset.pattern.permute.xlu0 5
    %95 = vperm.xlu0 %94, %v40
    %v96 = vpop.permute.xlu0 %95
    %v98 = vlaneseq
    %v99 = vshrl.u32 %v98, 7
    %v100 = vsub.s32 5, %v99
    %v101 = vrot.slane %v41, %v100
    %v102 = vmul.f32 %v96, %v101
    %v103 = vadd.f32 %v93, %v102
    %104 = vset.pattern.permute.xlu0 6
    %105 = vperm.xlu0 %104, %v40
    %v106 = vpop.permute.xlu0 %105
    %v108 = vlaneseq
    %v109 = vshrl.u32 %v108, 7
    %v110 = vsub.s32 6, %v109
    %v111 = vrot.slane %v41, %v110
    %v112 = vmul.f32 %v106, %v111
    %v113 = vadd.f32 %v103, %v112
    %114 = vset.pattern.permute.xlu0 7
    %115 = vperm.xlu0 %114, %v40
    %v116 = vpop.permute.xlu0 %115
    %v118 = vlaneseq
    %v119 = vshrl.u32 %v118, 7
    %v120 = vsub.s32 7, %v119
    %v121 = vrot.slane %v41, %v120
    %v122 = vmul.f32 %v116, %v121
    %v123 = vadd.f32 %v113, %v122
    %124 = vset.pattern.permute.xlu0 8
    %125 = vperm.xlu0 %124, %v40
    %v126 = vpop.permute.xlu0 %125
    %v128 = vlaneseq
    %v129 = vshrl.u32 %v128, 7
    %v130 = vsub.s32 0, %v129
    %v131 = vrot.slane %v42, %v130
    %v132 = vmul.f32 %v126, %v131
    %v133 = vadd.f32 %v123, %v132
    %134 = vset.pattern.permute.xlu0 9
    %135 = vperm.xlu0 %134, %v40
    %v136 = vpop.permute.xlu0 %135
    %v138 = vlaneseq
    %v139 = vshrl.u32 %v138, 7
    %v140 = vsub.s32 1, %v139
    %v141 = vrot.slane %v42, %v140
    %v142 = vmul.f32 %v136, %v141
    %v143 = vadd.f32 %v133, %v142
    %v144 = vld [vmem:[%s2] sm:$0x1]
    %v146 = vlaneseq
    %v147 = vshrl.u32 %v146, 7
    %v148 = vsub.s32 0, %v147
    %v149 = vrot.slane %v144, %v148
    %v151 = vadd.f32 %v143, %v149
    %152 = vst [vmem:[%s3] sm:$0xff] %v151
    // Predicated region
    $region22: #{affine_model_forward.1} parent=1 // pred_check
      _
    $region23: #{affine_model_forward.1} parent=1 // pred_check_branch
      %154 = sbr.rel (0) target = $region25
    $region24: #{affine_model_forward.1} parent=1 // pred_region
      _
    $region25: #{affine_model_forward.1} parent=1 // pred_fallthru
      _
    // Predicated region
    $region26: #{affine_model_forward.1} parent=1 // pred_check
      _
    $region27: #{affine_model_forward.1} parent=1 // pred_check_branch
      %156 = sbr.rel (0) target = $region29
    $region28: #{affine_model_forward.1} parent=1 // pred_region
      _
    $region29: #{affine_model_forward.1} parent=1 // pred_fallthru
      _
    %157 = vsyncpa [#allocation3], 1
    %158 = vsyncpa [#allocation5], 1

</llo_original>
